<compile_context>
chip_gen: v5e
topology: v5e:2x2
jax: 0.10.0
libtpu: 0.0.40
codegen_flags: <defaults>
</compile_context>

<pallas_src>
import functools
import math

import jax
import jax.numpy as jnp
from jax.experimental import pallas as pl
from jax.experimental.pallas import tpu as pltpu


def _round_up(a, b):
    return (a + b - 1) // b * b


def _pick_tile(dim, candidates):
    for c in candidates:
        if dim % c == 0:
            return c
    return None


def _vmem_limit(est_bytes):
    # >= scoped defaults everywhere, <= v7x physical VMEM with headroom.
    return int(min(max(2 * est_bytes + (2 << 20), 32 << 20), 56 << 20))


# ---------------- Stage 1: support = X2d @ W (batch folded into M) ----------

def _support_kernel(x_ref, w_ref, o_ref, acc_ref, *, compute_dtype):
    k = pl.program_id(2)

    @pl.when(k == 0)
    def _():
        acc_ref[...] = jnp.zeros_like(acc_ref)

    acc_ref[...] += jnp.dot(
        x_ref[...].astype(compute_dtype),
        w_ref[...].astype(compute_dtype),
        preferred_element_type=jnp.float32)

    @pl.when(k == pl.num_programs(2) - 1)
    def _():
        o_ref[...] = acc_ref[...].astype(o_ref.dtype)


# ---------------- Stage 2: out[b] = adj[b] @ support[b] (+ bias) ------------

def _make_aggregate_kernel(compute_dtype, support_resident, tk, has_bias):
    def kernel(adj_ref, s_ref, *rest):
        if has_bias:
            b_ref, o_ref = rest
        else:
            (o_ref,) = rest

        k = pl.program_id(2)

        @pl.when(k == 0)
        def _():
            o_ref[...] = jnp.zeros_like(o_ref)

        # In-kernel cast (no-op if adj was already padded+cast in the wrapper).
        a = adj_ref[0].astype(compute_dtype)

        if support_resident:
            start = pl.multiple_of(k * tk, tk)
            s = s_ref[0, pl.ds(start, tk), :]
        else:
            s = s_ref[0]

        # Accumulate directly into the resident f32 output block.
        o_ref[0] += jnp.dot(a, s, preferred_element_type=jnp.float32)

        if has_bias:
            @pl.when(k == pl.num_programs(2) - 1)
            def _():
                o_ref[0] = o_ref[0] + b_ref[0]

    return kernel


def gcn_forward(x, adj, weight, bias=None, *, compute_dtype=jnp.bfloat16):
    """Pallas GCN forward: adj @ (x @ weight) [+ bias].

    x:      (B, N, F_in)   float32
    adj:    (B, N, N)      float32
    weight: (F_in, F_out)  float32
    bias:   (1, 1, F_out) / (F_out,) float32 or None
    returns (B, N, F_out)  x.dtype
    """
    B, N, F_in = x.shape
    F_in_w, F_out = weight.shape
    assert F_in_w == F_in, "weight first dim must match x feature dim"
    out_dtype = x.dtype

    # ---- padding / tile selection -------------------------------------------
    f_pad = _round_up(F_out, 128)              # lane-dense output features
    if N < 128:
        n_pad = _round_up(N, 16)               # bf16 sublane packing
        tm = tk = n_pad                        # single full-extent tile
    else:
        n_pad = _round_up(N, 128)              # 128-aligned: minimal quadratic waste
        tm = _pick_tile(n_pad, (512, 256, 128))
        tk = _pick_tile(n_pad, (256, 128))

    # Stage-1 contraction tiling guard for large F_in.
    if F_in > 1024:
        f_in_pad = _round_up(F_in, 512)
        tk_s = 512
    else:
        f_in_pad = F_in
        tk_s = F_in

    pad_n = n_pad - N
    pad_fin = f_in_pad - F_in

    # ---- operand prep: avoid wrapper-side HBM passes when possible ----------
    if pad_n or pad_fin:
        # A pass over x is needed anyway -> fold the bf16 cast into it.
        x_use = jnp.pad(x.astype(compute_dtype),
                        ((0, 0), (0, pad_n), (0, pad_fin)))
    else:
        x_use = x                              # stays f32; cast in-kernel
    if pad_n:
        adj_use = jnp.pad(adj.astype(compute_dtype),
                          ((0, 0), (0, pad_n), (0, pad_n)))
    else:
        adj_use = adj                          # stays f32; cast in-kernel

    w_p = jnp.pad(weight.astype(compute_dtype),
                  ((0, pad_fin), (0, f_pad - F_out)))

    # ---- stage 1: support = (B*n_pad, f_in_pad) @ (f_in_pad, f_pad) ---------
    M = B * n_pad
    x2d = x_use.reshape(M, f_in_pad)
    if M <= 1024:
        tm_s = M
    else:
        tm_s = _pick_tile(M, (512, 256, 128)) or n_pad
    if f_pad <= 512:
        tn_s = f_pad
    else:
        tn_s = _pick_tile(f_pad, (512, 256, 128))

    x_bytes = jnp.dtype(x_use.dtype).itemsize
    est1 = (2 * (tm_s * tk_s * x_bytes + tk_s * tn_s * 2 + tm_s * tn_s * 2)
            + tm_s * tn_s * 4)

    support2d = pl.pallas_call(
        functools.partial(_support_kernel, compute_dtype=compute_dtype),
        out_shape=jax.ShapeDtypeStruct((M, f_pad), compute_dtype),
        grid_spec=pltpu.PrefetchScalarGridSpec(
            num_scalar_prefetch=0,
            grid=(M // tm_s, f_pad // tn_s, f_in_pad // tk_s),
            in_specs=[
                pl.BlockSpec((tm_s, tk_s), lambda i, j, k: (i, k)),
                pl.BlockSpec((tk_s, tn_s), lambda i, j, k: (k, j)),
            ],
            out_specs=pl.BlockSpec((tm_s, tn_s), lambda i, j, k: (i, j)),
            scratch_shapes=[pltpu.VMEM((tm_s, tn_s), jnp.float32)],
        ),
        compiler_params=pltpu.CompilerParams(
            dimension_semantics=("parallel", "parallel", "arbitrary"),
            vmem_limit_bytes=_vmem_limit(est1)),
    )(x2d, w_p)
    support = support2d.reshape(B, n_pad, f_pad)

    # ---- stage 2: out = adj @ support (+ bias), accumulate into o_ref -------
    k_steps = n_pad // tk
    support_resident = (k_steps > 1) and (n_pad * f_pad * 2 <= (4 << 20))

    adj_bytes = jnp.dtype(adj_use.dtype).itemsize
    if support_resident:
        sup_spec = pl.BlockSpec((1, n_pad, f_pad), lambda b, i, k: (b, 0, 0))
        sup_blk_bytes = n_pad * f_pad * 2
    else:
        sup_spec = pl.BlockSpec((1, tk, f_pad), lambda b, i, k: (b, k, 0))
        sup_blk_bytes = tk * f_pad * 2

    has_bias = bias is not None
    in_specs = [pl.BlockSpec((1, tm, tk), lambda b, i, k: (b, i, k)), sup_spec]
    operands = [adj_use, support]
    if has_bias:
        bias_arr = jnp.asarray(bias, dtype=jnp.float32)
        assert bias_arr.size == F_out, "bias must have exactly out_features elements"
        bias_p = jnp.pad(bias_arr.reshape(1, 1, F_out),
                         ((0, 0), (0, 0), (0, f_pad - F_out)))
        in_specs.append(pl.BlockSpec((1, 1, f_pad), lambda b, i, k: (0, 0, 0)))
        operands.append(bias_p)

    est2 = 2 * (tm * tk * adj_bytes + sup_blk_bytes + tm * f_pad * 4
                + (f_pad * 4 if has_bias else 0))

    kernel = _make_aggregate_kernel(compute_dtype, support_resident, tk, has_bias)

    out_p = pl.pallas_call(
        kernel,
        out_shape=jax.ShapeDtypeStruct((B, n_pad, f_pad), jnp.float32),
        grid_spec=pltpu.PrefetchScalarGridSpec(
            num_scalar_prefetch=0,
            grid=(B, n_pad // tm, k_steps),
            in_specs=in_specs,
            out_specs=pl.BlockSpec((1, tm, f_pad), lambda b, i, k: (b, i, 0)),
        ),
        compiler_params=pltpu.CompilerParams(
            dimension_semantics=("parallel", "parallel", "arbitrary"),
            vmem_limit_bytes=_vmem_limit(est2)),
    )(*operands)

    # Skip the trailing slice (an extra HBM pass) when nothing was padded.
    if n_pad == N and f_pad == F_out:
        out = out_p
    else:
        out = out_p[:, :N, :F_out]
    if out_dtype != jnp.float32:
        out = out.astype(out_dtype)
    return out


def init_gcn_params(key, in_features, out_features, bias=True):
    """Deterministic init matching GCN.reset_parameters (uniform(-stdv, stdv))."""
    stdv = 1.0 / math.sqrt(out_features)
    k_w, k_b = jax.random.split(key)
    weight = jax.random.uniform(
        k_w, (in_features, out_features), dtype=jnp.float32,
        minval=-stdv, maxval=stdv)
    b = None
    if bias:
        b = jax.random.uniform(
            k_b, (1, 1, out_features), dtype=jnp.float32,
            minval=-stdv, maxval=stdv)
    return weight, b


def _reference(x, adj, weight, bias):
    """Pure-JAX reference with matching bf16 input rounding, f32 accumulation."""
    xb = x.astype(jnp.bfloat16).astype(jnp.float32)
    ab = adj.astype(jnp.bfloat16).astype(jnp.float32)
    wb = weight.astype(jnp.bfloat16).astype(jnp.float32)
    support = jnp.matmul(xb, wb).astype(jnp.bfloat16).astype(jnp.float32)
    out = jnp.matmul(ab, support)
    if bias is not None:
        out = out + bias
    return out


def _run_case(key, B, N, in_features, out_features):
    k_params, k_x, k_adj = jax.random.split(key, 3)
    weight, bias = init_gcn_params(k_params, in_features, out_features, bias=True)
    x = jax.random.normal(k_x, (B, N, in_features), dtype=jnp.float32)
    a_raw = jax.random.uniform(k_adj, (B, N, N), dtype=jnp.float32)
    adj = 0.5 * (a_raw + jnp.swapaxes(a_raw, -1, -2))
    adj = adj / jnp.sum(adj, axis=-1, keepdims=True)

    # No-bias path (module default: GCN(..., bias=False)).
    out_nb = jax.block_until_ready(gcn_forward(x, adj, weight, None))
    ref_nb = _reference(x, adj, weight, None)
    assert out_nb.shape == (B, N, out_features)
    assert jnp.allclose(out_nb, ref_nb, atol=2e-2, rtol=2e-2)

    # Bias path.
    out_b = jax.block_until_ready(gcn_forward(x, adj, weight, bias))
    ref_b = _reference(x, adj, weight, bias)
    assert out_b.shape == (B, N, out_features)
    assert jnp.allclose(out_b, ref_b, atol=2e-2, rtol=2e-2)


if __name__ == "__main__":
    key = jax.random.PRNGKey(0)
    k0, k1, k2 = jax.random.split(key, 3)

    # Small graph: node-dim padding + wrapper-fused bf16 cast path.
    _run_case(k0, B=2, N=8, in_features=16, out_features=32)

    # Tile-aligned graph: adj passed f32, cast in-kernel, no wrapper pad.
    _run_case(k1, B=2, N=128, in_features=16, out_features=32)

    # Multi-k-tile graph: VMEM-resident support + dynamic k-slice path.
    _run_case(k2, B=1, N=384, in_features=16, out_features=32)

    print("KERNEL_OK")
</pallas_src>

<mosaic_0001>
module attributes {stable_mosaic.version = 11 : i64} {
  func.func @_support_kernel(%arg0: i32, %arg1: i32, %arg2: i32, %arg3: memref<32x16xbf16, #tpu.memory_space<vmem>>, %arg4: memref<16x128xbf16, #tpu.memory_space<vmem>>, %arg5: memref<32x128xbf16, #tpu.memory_space<vmem>>, %arg6: memref<32x128xf32, #tpu.memory_space<vmem>>) attributes {dimension_semantics = [#tpu.dimension_semantics<parallel>, #tpu.dimension_semantics<parallel>, #tpu.dimension_semantics<arbitrary>], iteration_bounds = array<i64: 1, 1, 1>, scalar_prefetch = 0 : i64, scratch_operands = 1 : i64, tpu.core_type = #tpu.core_type<tc>, window_params = [{transform_indices = @transform_0, window_bounds = array<i64: 32, 16>}, {transform_indices = @transform_1, window_bounds = array<i64: 16, 128>}, {transform_indices = @transform_2, window_bounds = array<i64: 32, 128>}]} {
    %c0_i32 = arith.constant 0 : i32
    %0 = arith.cmpi eq, %arg2, %c0_i32 : i32
    %1 = arith.extui %0 : i1 to i32
    %c0_i32_0 = arith.constant 0 : i32
    %2 = arith.cmpi ne, %1, %c0_i32_0 : i32
    scf.if %2 {
      %cst_10 = arith.constant 0.000000e+00 : f32
      %12 = vector.broadcast %cst_10 : f32 to vector<32x128xf32>
      %c0_11 = arith.constant 0 : index
      %c0_12 = arith.constant 0 : index
      %13 = vector.load %arg6[%c0_11, %c0_12] : memref<32x128xf32, #tpu.memory_space<vmem>>, vector<32x128xf32>
      tpu.vector_store %arg6[%c0_11, %c0_12], %12 {strides = array<i32>} : memref<32x128xf32, #tpu.memory_space<vmem>>, vector<32x128xf32>,
    } else {
    }
    %c0 = arith.constant 0 : index
    %c0_1 = arith.constant 0 : index
    %3 = vector.load %arg6[%c0, %c0_1] : memref<32x128xf32, #tpu.memory_space<vmem>>, vector<32x128xf32>
    %c0_2 = arith.constant 0 : index
    %c0_3 = arith.constant 0 : index
    %4 = vector.load %arg3[%c0_2, %c0_3] : memref<32x16xbf16, #tpu.memory_space<vmem>>, vector<32x16xbf16>
    %c0_4 = arith.constant 0 : index
    %c0_5 = arith.constant 0 : index
    %5 = vector.load %arg4[%c0_4, %c0_5] : memref<16x128xbf16, #tpu.memory_space<vmem>>, vector<16x128xbf16>
    %cst = arith.constant dense<0.000000e+00> : vector<32x128xf32>
    %6 = tpu.matmul %4, %5, %cst {dimension_numbers = #tpu.dot_dimension_numbers<[1], [0], [0], [1], [0, 0, 1, 1], [], []>} : vector<32x16xbf16>, vector<16x128xbf16>, vector<32x128xf32> -> vector<32x128xf32>
    %7 = arith.addf %3, %6 : vector<32x128xf32>
    %c0_6 = arith.constant 0 : index
    %c0_7 = arith.constant 0 : index
    %8 = vector.load %arg6[%c0_6, %c0_7] : memref<32x128xf32, #tpu.memory_space<vmem>>, vector<32x128xf32>
    tpu.vector_store %arg6[%c0_6, %c0_7], %7 {strides = array<i32>} : memref<32x128xf32, #tpu.memory_space<vmem>>, vector<32x128xf32>,
    %c0_i32_8 = arith.constant 0 : i32
    %9 = arith.cmpi eq, %arg2, %c0_i32_8 : i32
    %10 = arith.extui %9 : i1 to i32
    %c0_i32_9 = arith.constant 0 : i32
    %11 = arith.cmpi ne, %10, %c0_i32_9 : i32
    scf.if %11 {
      %c0_10 = arith.constant 0 : index
      %c0_11 = arith.constant 0 : index
      %12 = vector.load %arg6[%c0_10, %c0_11] : memref<32x128xf32, #tpu.memory_space<vmem>>, vector<32x128xf32>
      %13 = arith.truncf %12 : vector<32x128xf32> to vector<32x128xbf16>
      %c0_12 = arith.constant 0 : index
      %c0_13 = arith.constant 0 : index
      %14 = vector.load %arg5[%c0_12, %c0_13] : memref<32x128xbf16, #tpu.memory_space<vmem>>, vector<32x128xbf16>
      tpu.vector_store %arg5[%c0_12, %c0_13], %13 {strides = array<i32>} : memref<32x128xbf16, #tpu.memory_space<vmem>>, vector<32x128xbf16>,
    } else {
    }
    return
  }
  func.func @transform_0(%arg0: i32, %arg1: i32, %arg2: i32) -> (i32, i32) {
    %c0_i32 = arith.constant 0 : i32
    return %arg0, %arg2 : i32, i32
  }
  func.func @transform_1(%arg0: i32, %arg1: i32, %arg2: i32) -> (i32, i32) {
    %c0_i32 = arith.constant 0 : i32
    return %arg2, %arg1 : i32, i32
  }
  func.func @transform_2(%arg0: i32, %arg1: i32, %arg2: i32) -> (i32, i32) {
    %c0_i32 = arith.constant 0 : i32
    return %arg0, %arg1 : i32, i32
  }
}

</mosaic_0001>

<llo_original>
// kernel: tpu_custom_call.1
$region0: #{tpu_custom_call.1}
  #allocation0 [shape = 'u32[]', space=smem, size = 0x4, offset = 0x4, fixed_abs, tag = 'smem constant byte address 0x4 - core index']
  #allocation1 [shape = 'u32[72,128]{1,0:T(1,128)}', space=vmem, size = 0x9000, scoped, tag = 'internal scratch']
  #allocation2 [shape = 'f32[32,128]{1,0:T(8,128)}', space=vmem, size = 0x4000, scoped, tag = 'scratch operand']
  %s0 = inlined_call_operand.vmem [shape: bf16[32,16], index: 0, kind: input, shape index: {}]
  %s1 = inlined_call_operand.vmem [shape: bf16[16,128], index: 1, kind: input, shape index: {}]
  %s2 = inlined_call_operand.hbm [shape: bf16[32,128], index: 2, kind: output, shape index: {}]
  %s3 = sld [smem:[#allocation0]]
  $region26: #{tpu_custom_call.1} parent=0
    _
  %s5 = ssub.s32 1, %s3
  %s6 = scalar_select 0, %s5, %s3
  $region1: #{tpu_custom_call.1} parent=0
    #allocation3 [shape = 'u8[8192]{0}', space=vmem, size = 0x2000, scoped, tag = 'output window, operand 0, single buffered']
    #allocation4 [shape = 's32[1]{0}', space=sflag, size = 0x4, scoped, tag = 'scoped memory for tpu_custom_call.1']
    %7 = vsyncpa [#allocation4], 0
    // Predicated region
    $region2: #{tpu_custom_call.1} parent=1 // pred_check
      _
    $region3: #{tpu_custom_call.1} parent=1 // pred_check_branch
      %9 = sbr.rel (0) target = $region5
    $region4: #{tpu_custom_call.1} parent=1 // pred_region
      _
    $region5: #{tpu_custom_call.1} parent=1 // pred_fallthru
      _
    // Predicated region
    $region6: #{tpu_custom_call.1} parent=1 // pred_check
      _
    $region7: #{tpu_custom_call.1} parent=1 // pred_check_branch
      %11 = sbr.rel (0) target = $region9
    $region8: #{tpu_custom_call.1} parent=1 // pred_region
      _
    $region9: #{tpu_custom_call.1} parent=1 // pred_fallthru
      _
    %p13 = scmp.eq.s32.totalorder 0, 0
    // Predicated region
    $region10: #{tpu_custom_call.1} parent=1 // pred_check
      %p14 = pneg %p13
    $region11: #{tpu_custom_call.1} parent=1 // pred_check_branch
      %16 = sbr.rel (%p14) target = $region13
    $region12: #{tpu_custom_call.1} parent=1 // pred_region
      %17 = vst [vmem:[#allocation2] sm:$0xff] 0.0
      %18 = vst [vmem:[#allocation2 + $0x8] sm:$0xff] 0.0
      %19 = vst [vmem:[#allocation2 + $0x10] sm:$0xff] 0.0
      %20 = vst [vmem:[#allocation2 + $0x18] sm:$0xff] 0.0
    $region13: #{tpu_custom_call.1} parent=1 // pred_fallthru
      _
    %v21 = vld [vmem:[#allocation2] sm:$0xff]
    %v22 = vld [vmem:[#allocation2 + $0x8] sm:$0xff]
    %v23 = vld [vmem:[#allocation2 + $0x10] sm:$0xff]
    %v24 = vld [vmem:[#allocation2 + $0x18] sm:$0xff]
    %v25 = vld [vmem:[%s0] sm:$0xf]
    %v26 = vld [vmem:[%s0 + $0x4] sm:$0xf]
    %v27 = vld [vmem:[%s0 + $0x8] sm:$0xf]
    %v28 = vld [vmem:[%s0 + $0xc] sm:$0xf]
    %v29 = vld [vmem:[%s1] sm:$0xf]
    %v30 = vld [vmem:[%s1 + $0x4] sm:$0xf]
    %v35 = vunpack.c.l.b16 %v25
    %v36 = vunpack.c.l.b16 %v26
    %v37 = vunpack.c.l.b16 %v27
    %v38 = vunpack.c.l.b16 %v28
    %v39 = vpack.c.b16 %v36, %v35
    %v40 = vpack.c.b16 %v38, %v37
    %v43 = vunpack.c.l.b16 %v29
    %v44 = vunpack.c.l.b16 %v30
    %v45 = vpack.c.b16 %v44, %v43
    %vm47 = vcmask 130048
    %v49 = vsel %vm47, %v39, 0
    %v52 = vsel %vm47, %v40, 0
    %54 = vmatpush.bf16.msra.mxu0 0
    %55 = vmatpush.bf16.msra.mxu0 0
    %56 = vmatpush.bf16.msra.mxu0 0
    %57 = vmatpush.bf16.msra.mxu0 0
    %58 = vmatpush.bf16.msra.mxu0 0
    %59 = vmatpush.bf16.msra.mxu0 0
    %60 = vmatpush.bf16.msra.mxu0 0
    %61 = vmatpush.bf16.msra.mxu0 %v45
    %62 = vmatmul.bf16.gmra.mxu0 %v49
    %v63 = vpop.f32.mrf.mxu0
    %v64 = vadd.f32 0.0, %v63
    %v65 = vpop.f32.mrf.mxu0
    %v66 = vadd.f32 0.0, %v65
    %67 = vmatmul.bf16.gmra.mxu0 %v52
    %v68 = vpop.f32.mrf.mxu0
    %v69 = vadd.f32 0.0, %v68
    %v70 = vpop.f32.mrf.mxu0
    %v71 = vadd.f32 0.0, %v70
    %72 = vdwg.mxu0
    %v73 = vadd.f32 %v21, %v64
    %v74 = vadd.f32 %v22, %v66
    %v75 = vadd.f32 %v23, %v69
    %v76 = vadd.f32 %v24, %v71
    %77 = vst [vmem:[#allocation2] sm:$0xff] %v73
    %78 = vst [vmem:[#allocation2 + $0x8] sm:$0xff] %v74
    %79 = vst [vmem:[#allocation2 + $0x10] sm:$0xff] %v75
    %80 = vst [vmem:[#allocation2 + $0x18] sm:$0xff] %v76
    // Predicated region
    $region14: #{tpu_custom_call.1} parent=1 // pred_check
      %p81 = pneg %p13
    $region15: #{tpu_custom_call.1} parent=1 // pred_check_branch
      %83 = sbr.rel (%p81) target = $region17
    $region16: #{tpu_custom_call.1} parent=1 // pred_region
      %v84 = vld [vmem:[#allocation2] sm:$0xff]
      %v85 = vld [vmem:[#allocation2 + $0x8] sm:$0xff]
      %v86 = vld [vmem:[#allocation2 + $0x10] sm:$0xff]
      %v87 = vld [vmem:[#allocation2 + $0x18] sm:$0xff]
      %v88 = vpack.c.bf16 %v84, %v84
      %v89 = vpack.c.bf16 %v85, %v85
      %v90 = vpack.c.bf16 %v86, %v86
      %v91 = vpack.c.bf16 %v87, %v87
      %92 = vst [vmem:[#allocation3] sm:$0xf] %v88
      %93 = vst [vmem:[#allocation3 + $0x4] sm:$0xf] %v89
      %94 = vst [vmem:[#allocation3 + $0x8] sm:$0xf] %v90
      %95 = vst [vmem:[#allocation3 + $0xc] sm:$0xf] %v91
    $region17: #{tpu_custom_call.1} parent=1 // pred_fallthru
      _
    // Predicated region
    $region18: #{tpu_custom_call.1} parent=1 // pred_check
      _
    $region19: #{tpu_custom_call.1} parent=1 // pred_check_branch
      %97 = sbr.rel (0) target = $region21
    $region20: #{tpu_custom_call.1} parent=1 // pred_region
      %99 = vsyncadd [#allocation4], 0
      %s100 = sshll.u32 [#allocation3], 4
      %s101 = int_to_ptr.vmem [resolvable:$true] %s100
      %s102 = sshll.u32 %s2, 4
      %s103 = int_to_ptr.hbm [resolvable:$true] %s102
      %108 = dma.vmem_to_hbm [thread:$0]  %s101, 256, %s103, [#allocation4], 64, 64, 4
    $region21: #{tpu_custom_call.1} parent=1 // pred_fallthru
      _
    // Predicated region
    $region22: #{tpu_custom_call.1} parent=1 // pred_check
      _
    $region23: #{tpu_custom_call.1} parent=1 // pred_check_branch
      %110 = sbr.rel (0) target = $region25
    $region24: #{tpu_custom_call.1} parent=1 // pred_region
      %112 = dma.done [#allocation4], 256
    $region25: #{tpu_custom_call.1} parent=1 // pred_fallthru
      _
    %113 = vsyncpa [#allocation4], 1

</llo_original>
